<compile_context>
chip_gen: v7x
topology: tpu7x:2x2x1
jax: 0.10.0
libtpu: 0.0.40
codegen_flags: <defaults>
</compile_context>

<pallas_src>
import math

import jax
import jax.numpy as jnp
from jax.experimental import pallas as pl
from jax.experimental.pallas import tpu as pltpu

_LANE = 128                              # TPU lane width (unmasked vst width)
_TARGET_BLOCK_BYTES = 4 * 1024 * 1024    # ~4 MiB per block (per perf review)
_VMEM_LIMIT_BYTES = 32 * 1024 * 1024     # in+out double-buffered 4 MiB blocks


def _round_up(x: int, m: int) -> int:
    return ((x + m - 1) // m) * m


def _use_int_pow(gamma) -> bool:
    """Single predicate shared by kernel and CostEstimate."""
    g = float(gamma)
    return g == int(g) and 0 <= int(g) <= 16


def _ipow(x, p: int):
    """x**p by squaring, unrolled at trace time (pure VPU multiplies)."""
    if p == 0:
        return jnp.ones_like(x)
    result = None
    base = x
    while True:
        if p & 1:
            result = base if result is None else result * base
        p >>= 1
        if not p:
            return result
        base = base * base


def _make_kernel(gamma: float, gain: float):
    """Kernel body with gamma/gain baked in as compile-time constants."""
    gamma = float(gamma)
    gain = float(gain)
    int_gamma = _use_int_pow(gamma)

    def kernel(x_ref, o_ref):
        x = x_ref[...].astype(jnp.float32)
        if int_gamma:
            # Small integer gamma: multiply chain only, no transcendentals.
            y = _ipow(x, int(gamma))
            if gain != 1.0:
                y = jnp.float32(gain) * y
        elif gain > 0.0:
            # gain * x**gamma == exp(gamma*log(x) + log(gain)).
            # Valid for image inputs in [0, 1]: log(0) -> -inf -> exp -> 0,
            # matching pow. (Negative inputs -> NaN, same as torch pow with a
            # non-integer exponent.)
            y = jnp.exp(
                jnp.float32(gamma) * jnp.log(x) + jnp.float32(math.log(gain))
            )
        else:
            y = jnp.float32(gain) * jnp.exp(jnp.float32(gamma) * jnp.log(x))
        o_ref[...] = jnp.clip(y, 0.0, 1.0).astype(o_ref.dtype)

    return kernel


def adjust_gamma(
    img: jax.Array,
    gamma: float,
    gain: float = 1.0,
    *,
    donate: bool = False,
    block_bytes: int = _TARGET_BLOCK_BYTES,
) -> jax.Array:
    """Pallas implementation of torchvision's adjust_gamma for float images."""
    # TODO(synk): integer-dtype images (uint8) would need convert_image_dtype
    # round-tripping; only the floating-point path is implemented here.
    assert jnp.issubdtype(img.dtype, jnp.floating), "float images only"

    orig_shape = img.shape
    n = img.size
    if n == 0:
        return img
    itemsize = jnp.dtype(img.dtype).itemsize

    # --- lane-dense (rows, 128) view; pad only to the next 128 multiple -----
    flat = img.reshape(-1)                 # free bitcast for contiguous input
    n_pad = _round_up(n, _LANE)
    if n_pad != n:
        # TODO(synk): for large mis-aligned inputs this pad and the final [:n]
        # slice each add a full HBM pass; a tail-split (kernel on the first
        # n//128*128 elements, jnp on the <=127-element tail) would avoid it.
        flat = jnp.pad(flat, (0, n_pad - n), constant_values=1.0)
    rows = n_pad // _LANE
    x2d = flat.reshape(rows, _LANE)

    # --- dtype-aware block size: keep block bytes ~constant ------------------
    target_rows = max(8, (block_bytes // (_LANE * itemsize)) // 8 * 8)
    if rows <= target_rows:
        block_rows = rows                  # single full-extent block (legal)
    else:
        block_rows = target_rows           # multiple of 8; edge block masked
    grid = (pl.cdiv(rows, block_rows),)

    cost = pl.CostEstimate(
        flops=3 * n_pad,
        transcendentals=0 if _use_int_pow(gamma) else 2 * n_pad,
        bytes_accessed=2 * n_pad * itemsize,
    )

    out2d = pl.pallas_call(
        _make_kernel(gamma, gain),
        out_shape=jax.ShapeDtypeStruct((rows, _LANE), img.dtype),
        grid=grid,
        in_specs=[pl.BlockSpec((block_rows, _LANE), lambda i: (i, 0))],
        out_specs=pl.BlockSpec((block_rows, _LANE), lambda i: (i, 0)),
        compiler_params=pltpu.CompilerParams(
            # TODO(synk): on v7x prefer pltpu.CORE_PARALLEL so the grid is split
            # across both TensorCores; plain "parallel" is kept here because it
            # is guaranteed-safe on single-TC v5e/v6e.
            dimension_semantics=("parallel",),
            vmem_limit_bytes=_VMEM_LIMIT_BYTES,
        ),
        cost_estimate=cost,
        input_output_aliases={0: 0} if donate else {},
    )(x2d)

    out = out2d.reshape(-1)
    if n_pad != n:
        out = out[:n]
    return out.reshape(orig_shape)


if __name__ == "__main__":
    key = jax.random.PRNGKey(0)
    # Small NCHW image batch, values in [0, 1] as an image would be.
    # 2*4*16*16 = 2048 elements -> exercises the zero-copy 128-aligned path.
    x = jax.random.uniform(key, (2, 4, 16, 16), dtype=jnp.float32)

    gamma, gain = 2.2, 1.5
    out = jax.block_until_ready(adjust_gamma(x, gamma=gamma, gain=gain))
    ref = jnp.clip(gain * jnp.power(x, gamma), 0.0, 1.0)
    assert out.shape == x.shape and out.dtype == x.dtype
    assert jnp.allclose(out, ref, atol=1e-5, rtol=1e-5)

    # Integer-gamma fast path + non-128-aligned element count (pad/slice path).
    x2 = jax.random.uniform(jax.random.PRNGKey(1), (1, 3, 10, 10), dtype=jnp.float32)
    out2 = jax.block_until_ready(adjust_gamma(x2, gamma=2.0, gain=0.8))
    ref2 = jnp.clip(0.8 * jnp.power(x2, 2.0), 0.0, 1.0)
    assert out2.shape == x2.shape and out2.dtype == x2.dtype
    assert jnp.allclose(out2, ref2, atol=1e-5, rtol=1e-5)

    # Multi-block grid with a masked partial last row-block (tiny block_bytes
    # forces grid > 1 at a small test shape): 1*3*34*34 = 3468 -> rows = 28,
    # block_rows = 8, grid = 4, last block partial.
    x3 = jax.random.uniform(jax.random.PRNGKey(2), (1, 3, 34, 34), dtype=jnp.float32)
    out3 = jax.block_until_ready(
        adjust_gamma(x3, gamma=0.5, gain=1.0, block_bytes=8 * _LANE * 4)
    )
    ref3 = jnp.clip(jnp.power(x3, 0.5), 0.0, 1.0)
    assert jnp.allclose(out3, ref3, atol=1e-5, rtol=1e-5)

    print("KERNEL_OK")
</pallas_src>

<mosaic_0001>
module attributes {stable_mosaic.version = 11 : i64} {
  func.func @kernel(%arg0: i32, %arg1: memref<16x128xf32, #tpu.memory_space<vmem>>, %arg2: memref<16x128xf32, #tpu.memory_space<vmem>>) attributes {dimension_semantics = [#tpu.dimension_semantics<parallel>], iteration_bounds = array<i64: 1>, scalar_prefetch = 0 : i64, scratch_operands = 0 : i64, tpu.core_type = #tpu.core_type<tc>, window_params = [{transform_indices = @transform_0, window_bounds = array<i64: 16, 128>}, {transform_indices = @transform_1, window_bounds = array<i64: 16, 128>}]} {
    %c0 = arith.constant 0 : index
    %c0_0 = arith.constant 0 : index
    %0 = vector.load %arg1[%c0, %c0_0] : memref<16x128xf32, #tpu.memory_space<vmem>>, vector<16x128xf32>
    %1 = math.log %0 : vector<16x128xf32>
    %cst = arith.constant 2.200000e+00 : f32
    %2 = vector.broadcast %cst : f32 to vector<16x128xf32>
    %3 = arith.mulf %2, %1 : vector<16x128xf32>
    %cst_1 = arith.constant 0.405465096 : f32
    %4 = vector.broadcast %cst_1 : f32 to vector<16x128xf32>
    %5 = arith.addf %3, %4 : vector<16x128xf32>
    %6 = math.exp %5 : vector<16x128xf32>
    %cst_2 = arith.constant 0.000000e+00 : f32
    %cst_3 = arith.constant 1.000000e+00 : f32
    %7 = vector.broadcast %cst_2 : f32 to vector<16x128xf32>
    %8 = arith.maximumf %7, %6 : vector<16x128xf32>
    %9 = vector.broadcast %cst_3 : f32 to vector<16x128xf32>
    %10 = arith.minimumf %9, %8 : vector<16x128xf32>
    %c0_4 = arith.constant 0 : index
    %c0_5 = arith.constant 0 : index
    %11 = vector.load %arg2[%c0_4, %c0_5] : memref<16x128xf32, #tpu.memory_space<vmem>>, vector<16x128xf32>
    tpu.vector_store %arg2[%c0_4, %c0_5], %10 {strides = array<i32>} : memref<16x128xf32, #tpu.memory_space<vmem>>, vector<16x128xf32>,
    return
  }
  func.func @transform_0(%arg0: i32) -> (i32, i32) {
    %c0_i32 = arith.constant 0 : i32
    %c0_i32_0 = arith.constant 0 : i32
    return %arg0, %c0_i32 : i32, i32
  }
  func.func @transform_1(%arg0: i32) -> (i32, i32) {
    %c0_i32 = arith.constant 0 : i32
    %c0_i32_0 = arith.constant 0 : i32
    return %arg0, %c0_i32 : i32, i32
  }
}

</mosaic_0001>

<llo_original>
// kernel: tpu_custom_call.1
$region0: #{tpu_custom_call.1}
  #allocation0 [shape = 'u32[]', space=smem, size = 0x4, offset = 0x4, fixed_abs, tag = 'smem constant byte address 0x4 - core index']
  #allocation1 [shape = 'u32[144,128]{1,0:T(1,128)}', space=vmem, size = 0x12000, scoped, tag = 'internal scratch']
  %s0 = inlined_call_operand.hbm [shape: f32[16,128], index: 0, kind: input, shape index: {}]
  %s1 = inlined_call_operand.hbm [shape: f32[16,128], index: 1, kind: output, shape index: {}]
  %s2 = sld [smem:[#allocation0]]
  $region18: #{tpu_custom_call.1} parent=0
    _
  %s4 = ssub.s32 1, %s2
  %s5 = scalar_select 0, %s4, %s2
  $region1: #{tpu_custom_call.1} parent=0
    #allocation2 [shape = 'u8[8192]{0}', space=vmem, size = 0x2000, scoped, tag = 'input window, operand 0, single buffered']
    #allocation3 [shape = 's32[1]{0}', space=sflag, size = 0x4, scoped, tag = 'scoped memory for tpu_custom_call.1']
    #allocation4 [shape = 's32[1]{0}', space=sflag, size = 0x4, scoped, tag = 'scoped memory for tpu_custom_call.1']
    #allocation5 [shape = 'u8[8192]{0}', space=vmem, size = 0x2000, scoped, tag = 'output window, operand 0, single buffered']
    %6 = vsyncpa [#allocation3], 0
    %7 = vsyncpa [#allocation4], 0
    // Predicated region
    $region2: #{tpu_custom_call.1} parent=1 // pred_check
      _
    $region3: #{tpu_custom_call.1} parent=1 // pred_check_branch
      %9 = sbr.rel (0) target = $region5
    $region4: #{tpu_custom_call.1} parent=1 // pred_region
      %s11 = ssub.s32 256, 256
      %12 = vsyncadd [#allocation3], %s11
      %s13 = sshll.u32 [#allocation2], 4
      %s14 = int_to_ptr.vmem [resolvable:$true] %s13
      %19 = dma.hbm_to_vmem [thread:$0]  %s0, 256, %s14, [#allocation3], 128, 128, 8
    $region5: #{tpu_custom_call.1} parent=1 // pred_fallthru
      _
    // Predicated region
    $region6: #{tpu_custom_call.1} parent=1 // pred_check
      _
    $region7: #{tpu_custom_call.1} parent=1 // pred_check_branch
      %21 = sbr.rel (0) target = $region9
    $region8: #{tpu_custom_call.1} parent=1 // pred_region
      %22 = dma.done [#allocation3], 256
    $region9: #{tpu_custom_call.1} parent=1 // pred_fallthru
      _
    %v23 = vld [vmem:[#allocation2] sm:$0xff]
    %v24 = vld [vmem:[#allocation2 + $0x8] sm:$0xff]
    %v25 = vlog2.pop %v23
    %v26 = vmul.f32 %v25, 0.6931472
    %v27 = vlog2.pop %v24
    %v28 = vmul.f32 %v27, 0.6931472
    %v29 = vmul.f32 %v26, 2.2
    %v30 = vmul.f32 %v28, 2.2
    %v31 = vadd.f32 %v29, 0.4054651
    %v32 = vadd.f32 %v30, 0.4054651
    %v33 = vmul.f32 %v31, 1.442695
    %v34 = vpow.pop %v33
    %v35 = vmul.f32 %v32, 1.442695
    %v36 = vpow.pop %v35
    %v37 = vmax.f32 %v34, 0.0
    %v38 = vmax.f32 %v36, 0.0
    %v39 = vmin.f32 %v37, 1.0
    %v40 = vmin.f32 %v38, 1.0
    %41 = vst [vmem:[#allocation5] sm:$0xff] %v39
    %42 = vst [vmem:[#allocation5 + $0x8] sm:$0xff] %v40
    // Predicated region
    $region10: #{tpu_custom_call.1} parent=1 // pred_check
      _
    $region11: #{tpu_custom_call.1} parent=1 // pred_check_branch
      %44 = sbr.rel (0) target = $region13
    $region12: #{tpu_custom_call.1} parent=1 // pred_region
      %s46 = ssub.s32 256, 256
      %47 = vsyncadd [#allocation4], %s46
      %s48 = sshll.u32 [#allocation5], 4
      %s49 = int_to_ptr.vmem [resolvable:$true] %s48
      %54 = dma.vmem_to_hbm [thread:$0]  %s49, 256, %s1, [#allocation4], 128, 128, 8
    $region13: #{tpu_custom_call.1} parent=1 // pred_fallthru
      _
    // Predicated region
    $region14: #{tpu_custom_call.1} parent=1 // pred_check
      _
    $region15: #{tpu_custom_call.1} parent=1 // pred_check_branch
      %56 = sbr.rel (0) target = $region17
    $region16: #{tpu_custom_call.1} parent=1 // pred_region
      %57 = dma.done [#allocation4], 256
    $region17: #{tpu_custom_call.1} parent=1 // pred_fallthru
      _
    %58 = vsyncpa [#allocation3], 1
    %59 = vsyncpa [#allocation4], 1

</llo_original>
